<compile_context>
chip_gen: v7x
topology: tpu7x:2x2x1
jax: 0.10.0
libtpu: 0.0.40
codegen_flags: <defaults>
</compile_context>

<pallas_src>
import jax
import jax.numpy as jnp
from jax.experimental import pallas as pl
from jax.experimental.pallas import tpu as pltpu

_LANE = 128
_SUBLANE = 8


def _round_up(n, m):
    return ((n + m - 1) // m) * m


def _fused_linear_stack_kernel(x_ref, w_ref, b_ref, o_ref):
    """y = x @ W + b ; write y to both stacked slices of the output tile."""
    y = jnp.dot(x_ref[...], w_ref[...], preferred_element_type=jnp.float32)
    y = (y + b_ref[...]).astype(o_ref.dtype)
    # Duplicate directly from VMEM -> no intermediate (B, 24) array in HBM.
    o_ref[:, 0, :] = y
    o_ref[:, 1, :] = y


def mlp_stack_forward(x, w1, b1, w2, b2, *, tm=4096, use_pallas=None,
                      min_pallas_rows=256):
    """Forward matching the PyTorch Model: returns (B, 2, 24)."""
    B, in_f = x.shape
    out_f = w2.shape[1]

    # --- trace-time weight fusion (constant-folded by XLA on the params) ---
    w_fused = jnp.dot(w1, w2)                 # (24, 24)
    b_fused = jnp.dot(b1, w2) + b2            # (1, 24)

    # --- tiny-B fast path: a Pallas launch is pure fixed overhead there ---
    if use_pallas is None:
        use_pallas = B >= min_pallas_rows
    if not use_pallas:
        y = x @ w_fused + b_fused
        return jnp.broadcast_to(y[:, None, :], (B, 2, out_f))

    # --- batch tiling ---
    if B <= _SUBLANE:
        # Single full-array block ("block == full dim" escape hatch).
        tile_m = B
    else:
        # Multiple of 8 sublanes; keep >= 2 blocks so v7x megacore splits work.
        tile_m = min(tm, _round_up(pl.cdiv(B, 2), _SUBLANE))
    grid_m = pl.cdiv(B, tile_m)               # ragged last block masked by Pallas

    # --- VMEM budget (double-buffered blocks, lane/sublane padding included) ---
    itemsize = jnp.dtype(x.dtype).itemsize
    x_blk = _round_up(tile_m, _SUBLANE) * _LANE * itemsize            # 24 -> 128 lanes
    o_blk = tile_m * _SUBLANE * _LANE * itemsize                      # (2,24) -> (8,128)
    w_blk = _round_up(in_f, _SUBLANE) * _LANE * itemsize
    b_blk = _SUBLANE * _LANE * itemsize
    needed = 2 * (x_blk + o_blk + w_blk + b_blk)
    vmem_limit = int(min(needed + (16 << 20), 64 << 20))              # v7x phys = 64 MiB

    out = pl.pallas_call(
        _fused_linear_stack_kernel,
        out_shape=jax.ShapeDtypeStruct((B, 2, out_f), x.dtype),
        grid=(grid_m,),
        in_specs=[
            pl.BlockSpec((tile_m, in_f), lambda i: (i, 0)),           # x tile
            pl.BlockSpec((in_f, out_f), lambda i: (0, 0)),            # fused W (grid-invariant)
            pl.BlockSpec((1, out_f), lambda i: (0, 0)),               # fused b (grid-invariant)
        ],
        out_specs=pl.BlockSpec((tile_m, 2, out_f), lambda i: (i, 0, 0)),
        compiler_params=pltpu.CompilerParams(
            dimension_semantics=("parallel",),                        # megacore split on v7x
            vmem_limit_bytes=vmem_limit,
        ),
    )(x, w_fused, b_fused)
    return out


def init_params(key):
    """Deterministic init mimicking PyTorch's default Linear init."""
    k1, k2, k3, k4 = jax.random.split(key, 4)
    in1, out1 = 24, 16
    in2, out2 = 16, 24
    bound1 = 1.0 / jnp.sqrt(jnp.float32(in1))
    bound2 = 1.0 / jnp.sqrt(jnp.float32(in2))
    # Stored as (in_features, out_features) so the math is x @ W.
    w1 = jax.random.uniform(k1, (in1, out1), jnp.float32, -bound1, bound1)
    b1 = jax.random.uniform(k2, (1, out1), jnp.float32, -bound1, bound1)
    w2 = jax.random.uniform(k3, (in2, out2), jnp.float32, -bound2, bound2)
    b2 = jax.random.uniform(k4, (1, out2), jnp.float32, -bound2, bound2)
    return w1, b1, w2, b2


def reference_forward(x, w1, b1, w2, b2):
    """Pure-JAX reference matching the PyTorch forward (two matmuls + stack)."""
    h = x @ w1 + b1                           # (B, 16)
    h2 = jnp.stack((h, h), axis=1)            # (B, 2, 16)
    return h2 @ w2 + b2                       # (B, 2, 24)


if __name__ == "__main__":
    key = jax.random.PRNGKey(0)
    kx, kp, kx2 = jax.random.split(key, 3)
    w1, b1, w2, b2 = init_params(kp)

    # Spec-sized input (B=2). Force the Pallas path so the kernel itself runs.
    x = jax.random.normal(kx, (2, 24), jnp.float32)
    out = mlp_stack_forward(x, w1, b1, w2, b2, use_pallas=True)
    out = jax.block_until_ready(out)
    ref = reference_forward(x, w1, b1, w2, b2)
    assert out.shape == (2, 2, 24), out.shape
    assert jnp.allclose(out, ref, atol=1e-4, rtol=1e-4), "mismatch vs reference (B=2)"

    # Larger non-multiple-of-tile batch: exercises multi-block grid, megacore
    # 'parallel' axis, and the in-grid ragged last block (no wrapper pad/slice).
    xb = jax.random.normal(kx2, (300, 24), jnp.float32)
    outb = mlp_stack_forward(xb, w1, b1, w2, b2, tm=128, use_pallas=True)
    outb = jax.block_until_ready(outb)
    refb = reference_forward(xb, w1, b1, w2, b2)
    assert outb.shape == (300, 2, 24), outb.shape
    assert jnp.allclose(outb, refb, atol=1e-4, rtol=1e-4), "mismatch vs reference (B=300)"

    print("KERNEL_OK")
</pallas_src>

<mosaic_0001>
module attributes {stable_mosaic.version = 11 : i64} {
  func.func @_fused_linear_stack_kernel(%arg0: i32, %arg1: memref<2x24xf32, #tpu.memory_space<vmem>>, %arg2: memref<24x24xf32, #tpu.memory_space<vmem>>, %arg3: memref<1x24xf32, #tpu.memory_space<vmem>>, %arg4: memref<2x2x24xf32, #tpu.memory_space<vmem>>) attributes {dimension_semantics = [#tpu.dimension_semantics<parallel>], iteration_bounds = array<i64: 1>, scalar_prefetch = 0 : i64, scratch_operands = 0 : i64, tpu.core_type = #tpu.core_type<tc>, window_params = [{transform_indices = @transform_0, window_bounds = array<i64: 2, 24>}, {pipeline_mode = #tpu.pipeline_mode<synchronous>, transform_indices = @transform_1, window_bounds = array<i64: 24, 24>}, {pipeline_mode = #tpu.pipeline_mode<synchronous>, transform_indices = @transform_2, window_bounds = array<i64: 1, 24>}, {transform_indices = @transform_3, window_bounds = array<i64: 2, 2, 24>}]} {
    %c0 = arith.constant 0 : index
    %c0_0 = arith.constant 0 : index
    %0 = vector.load %arg1[%c0, %c0_0] : memref<2x24xf32, #tpu.memory_space<vmem>>, vector<2x24xf32>
    %c0_1 = arith.constant 0 : index
    %c0_2 = arith.constant 0 : index
    %1 = vector.load %arg2[%c0_1, %c0_2] : memref<24x24xf32, #tpu.memory_space<vmem>>, vector<24x24xf32>
    %cst = arith.constant dense<0.000000e+00> : vector<2x24xf32>
    %2 = tpu.matmul %0, %1, %cst {dimension_numbers = #tpu.dot_dimension_numbers<[1], [0], [0], [1], [0, 0, 1, 1], [], []>} : vector<2x24xf32>, vector<24x24xf32>, vector<2x24xf32> -> vector<2x24xf32>
    %c0_3 = arith.constant 0 : index
    %c0_4 = arith.constant 0 : index
    %3 = vector.load %arg3[%c0_3, %c0_4] : memref<1x24xf32, #tpu.memory_space<vmem>>, vector<1x24xf32>
    %4 = vector.broadcast %3 : vector<1x24xf32> to vector<2x24xf32>
    %5 = arith.addf %2, %4 : vector<2x24xf32>
    %c0_5 = arith.constant 0 : index
    %c0_6 = arith.constant 0 : index
    %c0_7 = arith.constant 0 : index
    %6 = vector.load %arg4[%c0_5, %c0_6, %c0_7] : memref<2x2x24xf32, #tpu.memory_space<vmem>>, vector<2x1x24xf32>
    %7 = vector.shape_cast %6 : vector<2x1x24xf32> to vector<2x24xf32>
    %8 = vector.shape_cast %5 : vector<2x24xf32> to vector<2x1x24xf32>
    tpu.vector_store %arg4[%c0_5, %c0_6, %c0_7], %8 {strides = array<i32>} : memref<2x2x24xf32, #tpu.memory_space<vmem>>, vector<2x1x24xf32>,
    %c0_8 = arith.constant 0 : index
    %c1 = arith.constant 1 : index
    %c0_9 = arith.constant 0 : index
    %9 = vector.load %arg4[%c0_8, %c1, %c0_9] : memref<2x2x24xf32, #tpu.memory_space<vmem>>, vector<2x1x24xf32>
    %10 = vector.shape_cast %9 : vector<2x1x24xf32> to vector<2x24xf32>
    %11 = vector.shape_cast %5 : vector<2x24xf32> to vector<2x1x24xf32>
    tpu.vector_store %arg4[%c0_8, %c1, %c0_9], %11 {strides = array<i32>} : memref<2x2x24xf32, #tpu.memory_space<vmem>>, vector<2x1x24xf32>,
    return
  }
  func.func @transform_0(%arg0: i32) -> (i32, i32) {
    %c0_i32 = arith.constant 0 : i32
    %c0_i32_0 = arith.constant 0 : i32
    return %arg0, %c0_i32 : i32, i32
  }
  func.func @transform_1(%arg0: i32) -> (i32, i32) {
    %c0_i32 = arith.constant 0 : i32
    %c0_i32_0 = arith.constant 0 : i32
    %c0_i32_1 = arith.constant 0 : i32
    return %c0_i32, %c0_i32_0 : i32, i32
  }
  func.func @transform_2(%arg0: i32) -> (i32, i32) {
    %c0_i32 = arith.constant 0 : i32
    %c0_i32_0 = arith.constant 0 : i32
    %c0_i32_1 = arith.constant 0 : i32
    return %c0_i32, %c0_i32_0 : i32, i32
  }
  func.func @transform_3(%arg0: i32) -> (i32, i32, i32) {
    %c0_i32 = arith.constant 0 : i32
    %c0_i32_0 = arith.constant 0 : i32
    %c0_i32_1 = arith.constant 0 : i32
    return %arg0, %c0_i32, %c0_i32_0 : i32, i32, i32
  }
}

</mosaic_0001>

<llo_original>
// kernel: tpu_custom_call.1
$region0: #{tpu_custom_call.1}
  #allocation0 [shape = 'u32[]', space=smem, size = 0x4, offset = 0x4, fixed_abs, tag = 'smem constant byte address 0x4 - core index']
  #allocation1 [shape = 'u32[144,128]{1,0:T(1,128)}', space=vmem, size = 0x12000, scoped, tag = 'internal scratch']
  %s0 = inlined_call_operand.hbm [shape: f32[2,24], index: 0, kind: input, shape index: {}]
  %s1 = inlined_call_operand.hbm [shape: f32[24,24], index: 1, kind: input, shape index: {}]
  %s2 = inlined_call_operand.vmem [shape: f32[1,24], index: 2, kind: input, shape index: {}]
  %s3 = inlined_call_operand.hbm [shape: f32[2,2,24], index: 3, kind: output, shape index: {}]
  %s4 = sld [smem:[#allocation0]]
  $region30: #{tpu_custom_call.1} parent=0
    _
  %s6 = ssub.s32 1, %s4
  %s7 = scalar_select 0, %s6, %s4
  $region1: #{tpu_custom_call.1} parent=0
    #allocation2 [shape = 'u8[1024]{0}', space=vmem, size = 0x400, scoped, tag = 'input window, operand 0, single buffered']
    #allocation3 [shape = 's32[1]{0}', space=sflag, size = 0x4, scoped, tag = 'scoped memory for tpu_custom_call.1']
    #allocation4 [shape = 's32[1]{0}', space=sflag, size = 0x4, scoped, tag = 'scoped memory for tpu_custom_call.1']
    #allocation5 [shape = 'u8[12288]{0}', space=vmem, size = 0x3000, scoped, tag = 'input window, operand 1, single buffered']
    #allocation6 [shape = 's32[1]{0}', space=sflag, size = 0x4, scoped, tag = 'scoped memory for tpu_custom_call.1']
    #allocation7 [shape = 'u8[2048]{0}', space=vmem, size = 0x800, scoped, tag = 'output window, operand 0, single buffered']
    %8 = vsyncpa [#allocation3], 0
    %9 = vsyncpa [#allocation6], 0
    %10 = vsyncpa [#allocation4], 0
    // Predicated region
    $region2: #{tpu_custom_call.1} parent=1 // pred_check
      _
    $region3: #{tpu_custom_call.1} parent=1 // pred_check_branch
      %12 = sbr.rel (0) target = $region5
    $region4: #{tpu_custom_call.1} parent=1 // pred_region
      %s14 = ssub.s32 32, 32
      %15 = vsyncadd [#allocation3], %s14
      %s17 = sshll.u32 [#allocation2], 4
      %s18 = int_to_ptr.vmem [resolvable:$true] %s17
      %20 = dma.hbm_to_vmem [thread:$0]  %s0, 32, %s18, [#allocation3]
    $region5: #{tpu_custom_call.1} parent=1 // pred_fallthru
      _
    // Predicated region
    $region6: #{tpu_custom_call.1} parent=1 // pred_check
      _
    $region7: #{tpu_custom_call.1} parent=1 // pred_check_branch
      %22 = sbr.rel (0) target = $region9
    $region8: #{tpu_custom_call.1} parent=1 // pred_region
      %s24 = ssub.s32 384, 384
      %25 = vsyncadd [#allocation6], %s24
      %s26 = sshll.u32 [#allocation5], 4
      %s27 = int_to_ptr.vmem [resolvable:$true] %s26
      %32 = dma.hbm_to_vmem [thread:$0]  %s1, 384, %s27, [#allocation6], 128, 128, 8
    $region9: #{tpu_custom_call.1} parent=1 // pred_fallthru
      _
    // Predicated region
    $region10: #{tpu_custom_call.1} parent=1 // pred_check
      _
    $region11: #{tpu_custom_call.1} parent=1 // pred_check_branch
      %34 = sbr.rel (0) target = $region13
    $region12: #{tpu_custom_call.1} parent=1 // pred_region
      _
    $region13: #{tpu_custom_call.1} parent=1 // pred_fallthru
      _
    // Predicated region
    $region14: #{tpu_custom_call.1} parent=1 // pred_check
      _
    $region15: #{tpu_custom_call.1} parent=1 // pred_check_branch
      %36 = sbr.rel (0) target = $region17
    $region16: #{tpu_custom_call.1} parent=1 // pred_region
      %37 = dma.done [#allocation3], 32
    $region17: #{tpu_custom_call.1} parent=1 // pred_fallthru
      _
    // Predicated region
    $region18: #{tpu_custom_call.1} parent=1 // pred_check
      _
    $region19: #{tpu_custom_call.1} parent=1 // pred_check_branch
      %39 = sbr.rel (0) target = $region21
    $region20: #{tpu_custom_call.1} parent=1 // pred_region
      %40 = dma.done [#allocation6], 384
    $region21: #{tpu_custom_call.1} parent=1 // pred_fallthru
      _
    %v41 = vld [vmem:[#allocation2] sm:$0x3]
    %v42 = vld [vmem:[#allocation5] sm:$0xff]
    %v43 = vld [vmem:[#allocation5 + $0x8] sm:$0xff]
    %v44 = vld [vmem:[#allocation5 + $0x10] sm:$0xff]
    %v45 = vld [vmem:[%s2] sm:$0x1]
    %v47 = vlaneseq
    %v48 = vshrl.u32 %v47, 7
    %v49 = vsub.s32 0, %v48
    %v50 = vrot.slane %v45, %v49
    %vm52 = vcmask 195584
    %v54 = vsel %vm52, %v41, 0
    %56 = vmatprep.subr.mxu0 0.0
    %57 = vmatpush1.msra.mxu0 %v42
    %58 = vmatprep.subr.mxu0 0.0
    %59 = vmatpush1.msra.mxu0 %v43
    %60 = vmatprep.subr.mxu0 0.0
    %61 = vmatpush1.msra.mxu0 %v44
    %62 = vmatprep.subr.mxu0 0.0
    %63 = vmatpush1.msra.mxu0 0.0
    %64 = vmatprep.subr.mxu0 0.0
    %65 = vmatpush1.msra.mxu0 0.0
    %66 = vmatprep.subr.mxu0 0.0
    %67 = vmatpush1.msra.mxu0 0.0
    %68 = vmatprep.subr.mxu0 0.0
    %69 = vmatpush1.msra.mxu0 0.0
    %70 = vmatprep.subr.mxu0 0.0
    %71 = vmatpush1.msra.mxu0 0.0
    %72 = vmatprep.subr.mxu0 0.0
    %73 = vmatpush1.msra.mxu0 0.0
    %74 = vmatprep.subr.mxu0 0.0
    %75 = vmatpush1.msra.mxu0 0.0
    %76 = vmatprep.subr.mxu0 0.0
    %77 = vmatpush1.msra.mxu0 0.0
    %78 = vmatprep.subr.mxu0 0.0
    %79 = vmatpush1.msra.mxu0 0.0
    %80 = vmatprep.subr.mxu0 0.0
    %81 = vmatpush1.msra.mxu0 0.0
    %82 = vmatprep.subr.mxu0 0.0
    %83 = vmatpush1.msra.mxu0 0.0
    %84 = vmatprep.subr.mxu0 0.0
    %85 = vmatpush1.msra.mxu0 0.0
    %86 = vmatprep.subr.mxu0 0.0
    %87 = vmatpush1.msra.mxu0 0.0
    %88 = vmatprep.subr.mxu0 0.0
    %89 = vmatpush1.msra.mxu0 0.0
    %90 = vmatprep.subr.mxu0 0.0
    %91 = vmatpush1.msra.mxu0 0.0
    %92 = vmatprep.subr.mxu0 0.0
    %93 = vmatpush1.msra.mxu0 0.0
    %94 = vmatprep.subr.mxu0 0.0
    %95 = vmatpush1.msra.mxu0 0.0
    %96 = vmatprep.subr.mxu0 0.0
    %97 = vmatpush1.msra.mxu0 0.0
    %98 = vmatprep.subr.mxu0 0.0
    %99 = vmatpush1.msra.mxu0 0.0
    %100 = vmatprep.subr.mxu0 0.0
    %101 = vmatpush1.msra.mxu0 0.0
    %102 = vmatprep.subr.mxu0 0.0
    %103 = vmatpush1.msra.mxu0 0.0
    %104 = vmatprep.subr.mxu0 0.0
    %105 = vmatpush1.msra.mxu0 0.0
    %106 = vmatprep.subr.mxu0 0.0
    %107 = vmatpush1.msra.mxu0 0.0
    %108 = vmatprep.subr.mxu0 0.0
    %109 = vmatpush1.msra.mxu0 0.0
    %110 = vmatprep.subr.mxu0 0.0
    %111 = vmatpush1.msra.mxu0 0.0
    %112 = vmatprep.subr.mxu0 0.0
    %113 = vmatpush1.msra.mxu0 0.0
    %114 = vmatprep.subr.mxu0 0.0
    %115 = vmatpush1.msra.mxu0 0.0
    %116 = vmatprep.subr.mxu0 0.0
    %117 = vmatpush1.msra.mxu0 0.0
    %118 = vmatprep.subr.mxu0 0.0
    %119 = vmatpush1.msra.mxu0 0.0
    %120 = vmatprep.mubr.f32.mxu0 0.0
    %121 = vmatmul.mubr.f32.gmra.mrb[0].mxu0 %v54
    %v122 = vpop.f32.mrb[0].mxu0
    %v123 = vadd.f32 %v50, %v122
    %v124 = vpop.f32.mrb[0].mxu0
    %125 = vdwg.mxu0
    %v128 = vunpack.c.l.s4 1966171168
    %v129 = vunpack.c.0.s8 %v128
    %v130 = vlaneseq
    %v131 = vshrl.u32 %v130, 7
    %v132 = vsub.s32 %v129, %v131
    %v133 = vrot.slane %v123, %v132
    %v134 = vcombine.high %v133, %v133
    %v136 = vunpack.c.l.s4 1966171168
    %v137 = vunpack.c.0.s8 %v136
    %v138 = vlaneseq
    %v139 = vshrl.u32 %v138, 7
    %v140 = vsub.s32 %v137, %v139
    %v141 = vrot.slane %v133, %v140
    %v143 = vunpack.c.l.s4 1966171168
    %v144 = vunpack.c.0.s8 %v143
    %v145 = vlaneseq
    %v146 = vshrl.u32 %v145, 7
    %v147 = vsub.s32 %v144, %v146
    %v148 = vrot.slane %v134, %v147
    %vm151 = vcmask 188416
    %152 = vst.msk [vmem:[#allocation7] sm:$0x1] %vm151, %v141
    %153 = vst.msk [vmem:[#allocation7 + $0x2] sm:$0x1] %vm151, %v148
    %154 = vst.msk [vmem:[#allocation7 + $0x1] sm:$0x1] %vm151, %v141
    %155 = vst.msk [vmem:[#allocation7 + $0x3] sm:$0x1] %vm151, %v148
    // Predicated region
    $region22: #{tpu_custom_call.1} parent=1 // pred_check
      _
    $region23: #{tpu_custom_call.1} parent=1 // pred_check_branch
      %157 = sbr.rel (0) target = $region25
    $region24: #{tpu_custom_call.1} parent=1 // pred_region
      %s159 = ssub.s32 64, 64
      %160 = vsyncadd [#allocation4], %s159
      %s161 = sshll.u32 [#allocation7], 4
      %s162 = int_to_ptr.vmem [resolvable:$true] %s161
      %167 = dma.vmem_to_hbm [thread:$0]  %s162, 64, %s3, [#allocation4], 32, 32, 2
    $region25: #{tpu_custom_call.1} parent=1 // pred_fallthru
      _
    // Predicated region
    $region26: #{tpu_custom_call.1} parent=1 // pred_check
      _
    $region27: #{tpu_custom_call.1} parent=1 // pred_check_branch
      %169 = sbr.rel (0) target = $region29
    $region28: #{tpu_custom_call.1} parent=1 // pred_region
      %170 = dma.done [#allocation4], 64
    $region29: #{tpu_custom_call.1} parent=1 // pred_fallthru
      _
    %171 = vsyncpa [#allocation3], 1
    %172 = vsyncpa [#allocation6], 1
    %173 = vsyncpa [#allocation4], 1

</llo_original>
